<compile_context>
chip_gen: v5e
topology: v5e:2x2
jax: 0.10.0
libtpu: 0.0.40
codegen_flags: <defaults>
</compile_context>

<pallas_src>
import math
import jax
import jax.numpy as jnp
from jax.experimental import pallas as pl
from jax.experimental.pallas import tpu as pltpu

ONE_DIV_SQRT_2PI = 1.0 / math.sqrt(2.0 * math.pi)


def mixdenoise_kernel(mu_ref, inv_sigma_ref, coef_ref, x_ref, out_ref):
    # mu_ref / inv_sigma_ref / coef_ref: (K,) f32 pre-folded scalars in SMEM
    # x_ref / out_ref: (TR, L) lane-dense batch slab in VMEM
    x = x_ref[...].astype(jnp.float32)
    acc = jnp.zeros(x.shape, jnp.float32)
    num_components = mu_ref.shape[0]
    for k in range(num_components):  # K is small & static -> unrolled VPU/EUP loop
        z = (x - mu_ref[k]) * inv_sigma_ref[k]
        acc = acc + coef_ref[k] * jnp.exp(-0.5 * (z * z))
    out_ref[...] = acc.astype(out_ref.dtype)


def mixdenoise_forward(x, mixes, means, stdvs, *, lanes=1024, rows_per_tile=512):
    """x: (B,) float32; mixes/means/stdvs: (K,) float32 -> (B,) float32."""
    B = x.shape[0]

    # Pre-fold GMM parameters once in the wrapper (K elements, negligible cost).
    pi = jax.nn.softmax(mixes.astype(jnp.float32))
    inv_sigma = 1.0 / jnp.exp(stdvs.astype(jnp.float32))
    coef = (pi * inv_sigma * ONE_DIV_SQRT_2PI).astype(jnp.float32)
    mu = means.astype(jnp.float32)

    # Lane-dense layout: batch -> (rows, L), L a multiple of 128 (<= `lanes`).
    L = min(lanes, 128 * pl.cdiv(B, 128))
    rows = pl.cdiv(B, L)
    if rows <= rows_per_tile:
        tr = rows                      # single row-tile equal to full rows dim
        rows_pad = rows
    else:
        tr = rows_per_tile             # multiple of 8 -> valid sublane tiling
        rows_pad = pl.cdiv(rows, tr) * tr
    b_pad = rows_pad * L

    xp = x.astype(jnp.float32)
    if b_pad != B:
        xp = jnp.pad(xp, (0, b_pad - B))   # padded tail is sliced off below
    x2 = xp.reshape(rows_pad, L)

    out2 = pl.pallas_call(
        mixdenoise_kernel,
        out_shape=jax.ShapeDtypeStruct((rows_pad, L), jnp.float32),
        grid_spec=pltpu.PrefetchScalarGridSpec(
            num_scalar_prefetch=0,
            grid=(rows_pad // tr,),
            in_specs=[
                pl.BlockSpec(memory_space=pltpu.MemorySpace.SMEM),  # mu        (K,)
                pl.BlockSpec(memory_space=pltpu.MemorySpace.SMEM),  # inv_sigma (K,)
                pl.BlockSpec(memory_space=pltpu.MemorySpace.SMEM),  # coef      (K,)
                pl.BlockSpec((tr, L), lambda i: (i, 0)),            # x row-tile
            ],
            out_specs=pl.BlockSpec((tr, L), lambda i: (i, 0)),
        ),
        compiler_params=pltpu.CompilerParams(
            dimension_semantics=("parallel",)),
    )(mu, inv_sigma, coef, x2)

    return out2.reshape(b_pad)[:B]


def mixdenoise_reference(x, mixes, means, stdvs):
    pi = jax.nn.softmax(mixes)
    sigma = jnp.exp(stdvs)
    z = (x[:, None] - means[None, :]) / sigma[None, :]
    g = jnp.exp(-0.5 * z * z) / sigma[None, :] * ONE_DIV_SQRT_2PI
    return jnp.sum(g * pi[None, :], axis=1)


if __name__ == "__main__":
    key = jax.random.PRNGKey(0)
    k1, k2, k3, k4, k5 = jax.random.split(key, 5)

    num_components = 4
    jitter = 0.01
    batch = 8

    # Deterministic parameter init mirroring MixDenoise.__init__:
    #   mixes ~ 1.0 + jitter*N(0,1); means ~ 0.0 + jitter*N(0,1); stdvs ~ 1.0 + jitter*N(0,1)
    mixes = (jnp.ones(num_components) +
             jitter * jax.random.normal(k1, (num_components,))).astype(jnp.float32)
    means = (jitter * jax.random.normal(k2, (num_components,))).astype(jnp.float32)
    stdvs = (jnp.ones(num_components) +
             jitter * jax.random.normal(k3, (num_components,))).astype(jnp.float32)

    # Small primary case (batch=8, padded up to one 128-lane row).
    x = jax.random.normal(k4, (batch,), dtype=jnp.float32)
    out = jax.block_until_ready(mixdenoise_forward(x, mixes, means, stdvs))
    ref = mixdenoise_reference(x, mixes, means, stdvs)
    assert out.shape == (batch,)
    assert jnp.allclose(out, ref, rtol=1e-5, atol=1e-6), (out, ref)

    # Secondary case exercising non-multiple-of-128 padding + tail slicing.
    batch2 = 300
    x2 = jax.random.normal(k5, (batch2,), dtype=jnp.float32)
    out2 = jax.block_until_ready(mixdenoise_forward(x2, mixes, means, stdvs))
    ref2 = mixdenoise_reference(x2, mixes, means, stdvs)
    assert out2.shape == (batch2,)
    assert jnp.allclose(out2, ref2, rtol=1e-5, atol=1e-6), (out2, ref2)

    print("KERNEL_OK")
</pallas_src>

<mosaic_0001>
module attributes {stable_mosaic.version = 11 : i64} {
  func.func @mixdenoise_kernel(%arg0: i32, %arg1: memref<4xf32, #tpu.memory_space<smem>>, %arg2: memref<4xf32, #tpu.memory_space<smem>>, %arg3: memref<4xf32, #tpu.memory_space<smem>>, %arg4: memref<1x128xf32, #tpu.memory_space<vmem>>, %arg5: memref<1x128xf32, #tpu.memory_space<vmem>>) attributes {dimension_semantics = [#tpu.dimension_semantics<parallel>], iteration_bounds = array<i64: 1>, scalar_prefetch = 0 : i64, scratch_operands = 0 : i64, tpu.core_type = #tpu.core_type<tc>, window_params = [{transform_indices = @transform_0, window_bounds = array<i64: 4>}, {transform_indices = @transform_1, window_bounds = array<i64: 4>}, {transform_indices = @transform_2, window_bounds = array<i64: 4>}, {transform_indices = @transform_3, window_bounds = array<i64: 1, 128>}, {transform_indices = @transform_4, window_bounds = array<i64: 1, 128>}]} {
    %c0 = arith.constant 0 : index
    %c0_0 = arith.constant 0 : index
    %0 = vector.load %arg4[%c0, %c0_0] : memref<1x128xf32, #tpu.memory_space<vmem>>, vector<1x128xf32>
    %cst = arith.constant 0.000000e+00 : f32
    %1 = vector.broadcast %cst : f32 to vector<1x128xf32>
    %c0_1 = arith.constant 0 : index
    %2 = memref.load %arg1[%c0_1] : memref<4xf32, #tpu.memory_space<smem>>
    %3 = vector.broadcast %2 : f32 to vector<1x128xf32>
    %4 = arith.subf %0, %3 : vector<1x128xf32>
    %c0_2 = arith.constant 0 : index
    %5 = memref.load %arg2[%c0_2] : memref<4xf32, #tpu.memory_space<smem>>
    %6 = vector.broadcast %5 : f32 to vector<1x128xf32>
    %7 = arith.mulf %4, %6 : vector<1x128xf32>
    %c0_3 = arith.constant 0 : index
    %8 = memref.load %arg3[%c0_3] : memref<4xf32, #tpu.memory_space<smem>>
    %9 = arith.mulf %7, %7 : vector<1x128xf32>
    %cst_4 = arith.constant -5.000000e-01 : f32
    %10 = vector.broadcast %cst_4 : f32 to vector<1x128xf32>
    %11 = arith.mulf %10, %9 : vector<1x128xf32>
    %12 = math.exp %11 : vector<1x128xf32>
    %13 = vector.broadcast %8 : f32 to vector<1x128xf32>
    %14 = arith.mulf %13, %12 : vector<1x128xf32>
    %15 = arith.addf %1, %14 : vector<1x128xf32>
    %c1 = arith.constant 1 : index
    %16 = memref.load %arg1[%c1] : memref<4xf32, #tpu.memory_space<smem>>
    %17 = vector.broadcast %16 : f32 to vector<1x128xf32>
    %18 = arith.subf %0, %17 : vector<1x128xf32>
    %c1_5 = arith.constant 1 : index
    %19 = memref.load %arg2[%c1_5] : memref<4xf32, #tpu.memory_space<smem>>
    %20 = vector.broadcast %19 : f32 to vector<1x128xf32>
    %21 = arith.mulf %18, %20 : vector<1x128xf32>
    %c1_6 = arith.constant 1 : index
    %22 = memref.load %arg3[%c1_6] : memref<4xf32, #tpu.memory_space<smem>>
    %23 = arith.mulf %21, %21 : vector<1x128xf32>
    %cst_7 = arith.constant -5.000000e-01 : f32
    %24 = vector.broadcast %cst_7 : f32 to vector<1x128xf32>
    %25 = arith.mulf %24, %23 : vector<1x128xf32>
    %26 = math.exp %25 : vector<1x128xf32>
    %27 = vector.broadcast %22 : f32 to vector<1x128xf32>
    %28 = arith.mulf %27, %26 : vector<1x128xf32>
    %29 = arith.addf %15, %28 : vector<1x128xf32>
    %c2 = arith.constant 2 : index
    %30 = memref.load %arg1[%c2] : memref<4xf32, #tpu.memory_space<smem>>
    %31 = vector.broadcast %30 : f32 to vector<1x128xf32>
    %32 = arith.subf %0, %31 : vector<1x128xf32>
    %c2_8 = arith.constant 2 : index
    %33 = memref.load %arg2[%c2_8] : memref<4xf32, #tpu.memory_space<smem>>
    %34 = vector.broadcast %33 : f32 to vector<1x128xf32>
    %35 = arith.mulf %32, %34 : vector<1x128xf32>
    %c2_9 = arith.constant 2 : index
    %36 = memref.load %arg3[%c2_9] : memref<4xf32, #tpu.memory_space<smem>>
    %37 = arith.mulf %35, %35 : vector<1x128xf32>
    %cst_10 = arith.constant -5.000000e-01 : f32
    %38 = vector.broadcast %cst_10 : f32 to vector<1x128xf32>
    %39 = arith.mulf %38, %37 : vector<1x128xf32>
    %40 = math.exp %39 : vector<1x128xf32>
    %41 = vector.broadcast %36 : f32 to vector<1x128xf32>
    %42 = arith.mulf %41, %40 : vector<1x128xf32>
    %43 = arith.addf %29, %42 : vector<1x128xf32>
    %c3 = arith.constant 3 : index
    %44 = memref.load %arg1[%c3] : memref<4xf32, #tpu.memory_space<smem>>
    %45 = vector.broadcast %44 : f32 to vector<1x128xf32>
    %46 = arith.subf %0, %45 : vector<1x128xf32>
    %c3_11 = arith.constant 3 : index
    %47 = memref.load %arg2[%c3_11] : memref<4xf32, #tpu.memory_space<smem>>
    %48 = vector.broadcast %47 : f32 to vector<1x128xf32>
    %49 = arith.mulf %46, %48 : vector<1x128xf32>
    %c3_12 = arith.constant 3 : index
    %50 = memref.load %arg3[%c3_12] : memref<4xf32, #tpu.memory_space<smem>>
    %51 = arith.mulf %49, %49 : vector<1x128xf32>
    %cst_13 = arith.constant -5.000000e-01 : f32
    %52 = vector.broadcast %cst_13 : f32 to vector<1x128xf32>
    %53 = arith.mulf %52, %51 : vector<1x128xf32>
    %54 = math.exp %53 : vector<1x128xf32>
    %55 = vector.broadcast %50 : f32 to vector<1x128xf32>
    %56 = arith.mulf %55, %54 : vector<1x128xf32>
    %57 = arith.addf %43, %56 : vector<1x128xf32>
    %c0_14 = arith.constant 0 : index
    %c0_15 = arith.constant 0 : index
    %58 = vector.load %arg5[%c0_14, %c0_15] : memref<1x128xf32, #tpu.memory_space<vmem>>, vector<1x128xf32>
    tpu.vector_store %arg5[%c0_14, %c0_15], %57 {strides = array<i32>} : memref<1x128xf32, #tpu.memory_space<vmem>>, vector<1x128xf32>,
    return
  }
  func.func @transform_0(%arg0: i32) -> i32 {
    %c0_i32 = arith.constant 0 : i32
    %c0_i32_0 = arith.constant 0 : i32
    return %c0_i32 : i32
  }
  func.func @transform_1(%arg0: i32) -> i32 {
    %c0_i32 = arith.constant 0 : i32
    %c0_i32_0 = arith.constant 0 : i32
    return %c0_i32 : i32
  }
  func.func @transform_2(%arg0: i32) -> i32 {
    %c0_i32 = arith.constant 0 : i32
    %c0_i32_0 = arith.constant 0 : i32
    return %c0_i32 : i32
  }
  func.func @transform_3(%arg0: i32) -> (i32, i32) {
    %c0_i32 = arith.constant 0 : i32
    %c0_i32_0 = arith.constant 0 : i32
    return %arg0, %c0_i32 : i32, i32
  }
  func.func @transform_4(%arg0: i32) -> (i32, i32) {
    %c0_i32 = arith.constant 0 : i32
    %c0_i32_0 = arith.constant 0 : i32
    return %arg0, %c0_i32 : i32, i32
  }
}

</mosaic_0001>

<llo_original>
// kernel: tpu_custom_call.1
$region0: #{tpu_custom_call.1}
  #allocation0 [shape = 'u32[]', space=smem, size = 0x4, offset = 0x4, fixed_abs, tag = 'smem constant byte address 0x4 - core index']
  #allocation1 [shape = 'u32[72,128]{1,0:T(1,128)}', space=vmem, size = 0x9000, scoped, tag = 'internal scratch']
  %s0 = inlined_call_operand.hbm [shape: f32[4], index: 0, kind: input, shape index: {}]
  %s1 = inlined_call_operand.hbm [shape: f32[4], index: 1, kind: input, shape index: {}]
  %s2 = inlined_call_operand.vmem [shape: f32[4], index: 2, kind: input, shape index: {}]
  %s3 = inlined_call_operand.vmem [shape: f32[1,128], index: 3, kind: input, shape index: {}]
  %s4 = inlined_call_operand.hbm [shape: f32[1,128], index: 4, kind: output, shape index: {}]
  %s5 = sld [smem:[#allocation0]]
  $region38: #{tpu_custom_call.1} parent=0
    _
  %s7 = ssub.s32 1, %s5
  %s8 = scalar_select 0, %s7, %s5
  $region1: #{tpu_custom_call.1} parent=0
    #allocation2 [shape = 'u8[512]{0}', space=smem, size = 0x200, scoped, tag = 'input window, operand 0, single buffered']
    #allocation3 [shape = 's32[1]{0}', space=sflag, size = 0x4, scoped, tag = 'scoped memory for tpu_custom_call.1']
    #allocation4 [shape = 's32[1]{0}', space=sflag, size = 0x4, scoped, tag = 'scoped memory for tpu_custom_call.1']
    #allocation5 [shape = 's32[1]{0}', space=sflag, size = 0x4, scoped, tag = 'scoped memory for tpu_custom_call.1']
    #allocation6 [shape = 'u8[512]{0}', space=smem, size = 0x200, scoped, tag = 'input window, operand 1, single buffered']
    #allocation7 [shape = 's32[1]{0}', space=sflag, size = 0x4, scoped, tag = 'scoped memory for tpu_custom_call.1']
    #allocation8 [shape = 'u8[512]{0}', space=smem, size = 0x200, scoped, tag = 'input window, operand 2, single buffered']
    #allocation9 [shape = 'u8[512]{0}', space=vmem, size = 0x400, scoped, tag = 'output window, operand 0, single buffered']
    %9 = vsyncpa [#allocation4], 0
    %10 = vsyncpa [#allocation7], 0
    %11 = vsyncpa [#allocation5], 0
    %12 = vsyncpa [#allocation3], 0
    // Predicated region
    $region2: #{tpu_custom_call.1} parent=1 // pred_check
      _
    $region3: #{tpu_custom_call.1} parent=1 // pred_check_branch
      %14 = sbr.rel (0) target = $region5
    $region4: #{tpu_custom_call.1} parent=1 // pred_region
      %16 = vsyncadd [#allocation4], 0
      %s18 = sshll.u32 %s0, 4
      %s19 = int_to_ptr.hbm [resolvable:$true] %s18
      %21 = dma.hbm_to_smem %s19, 16, [#allocation2], [#allocation4]
    $region5: #{tpu_custom_call.1} parent=1 // pred_fallthru
      _
    // Predicated region
    $region6: #{tpu_custom_call.1} parent=1 // pred_check
      _
    $region7: #{tpu_custom_call.1} parent=1 // pred_check_branch
      %23 = sbr.rel (0) target = $region9
    $region8: #{tpu_custom_call.1} parent=1 // pred_region
      %25 = vsyncadd [#allocation7], 0
      %s27 = sshll.u32 %s1, 4
      %s28 = int_to_ptr.hbm [resolvable:$true] %s27
      %30 = dma.hbm_to_smem %s28, 16, [#allocation6], [#allocation7]
    $region9: #{tpu_custom_call.1} parent=1 // pred_fallthru
      _
    // Predicated region
    $region10: #{tpu_custom_call.1} parent=1 // pred_check
      _
    $region11: #{tpu_custom_call.1} parent=1 // pred_check_branch
      %32 = sbr.rel (0) target = $region13
    $region12: #{tpu_custom_call.1} parent=1 // pred_region
      %34 = vsyncadd [#allocation5], 0
      %s36 = sshll.u32 %s2, 4
      %s37 = int_to_ptr.vmem [resolvable:$true] %s36
      %39 = dma.vmem_to_smem %s37, 16, [#allocation8], [#allocation5]
    $region13: #{tpu_custom_call.1} parent=1 // pred_fallthru
      _
    // Predicated region
    $region14: #{tpu_custom_call.1} parent=1 // pred_check
      _
    $region15: #{tpu_custom_call.1} parent=1 // pred_check_branch
      %41 = sbr.rel (0) target = $region17
    $region16: #{tpu_custom_call.1} parent=1 // pred_region
      _
    $region17: #{tpu_custom_call.1} parent=1 // pred_fallthru
      _
    // Predicated region
    $region18: #{tpu_custom_call.1} parent=1 // pred_check
      _
    $region19: #{tpu_custom_call.1} parent=1 // pred_check_branch
      %43 = sbr.rel (0) target = $region21
    $region20: #{tpu_custom_call.1} parent=1 // pred_region
      %45 = dma.done [#allocation4], 16
    $region21: #{tpu_custom_call.1} parent=1 // pred_fallthru
      _
    // Predicated region
    $region22: #{tpu_custom_call.1} parent=1 // pred_check
      _
    $region23: #{tpu_custom_call.1} parent=1 // pred_check_branch
      %47 = sbr.rel (0) target = $region25
    $region24: #{tpu_custom_call.1} parent=1 // pred_region
      %49 = dma.done [#allocation7], 16
    $region25: #{tpu_custom_call.1} parent=1 // pred_fallthru
      _
    // Predicated region
    $region26: #{tpu_custom_call.1} parent=1 // pred_check
      _
    $region27: #{tpu_custom_call.1} parent=1 // pred_check_branch
      %51 = sbr.rel (0) target = $region29
    $region28: #{tpu_custom_call.1} parent=1 // pred_region
      %53 = dma.done [#allocation5], 16
    $region29: #{tpu_custom_call.1} parent=1 // pred_fallthru
      _
    %54 = sfence
    %v55 = vld [vmem:[%s3] sm:$0x1]
    %s56 = sld [smem:[#allocation2]]
    %v57 = vstv %s56
    %v58 = vsub.f32 %v55, %v57
    %s59 = sld [smem:[#allocation6]]
    %v60 = vstv %s59
    %v61 = vmul.f32 %v58, %v60
    %s62 = sld [smem:[#allocation8]]
    %v63 = vmul.f32 %v61, %v61
    %v64 = vmul.f32 %v63, -0.5
    %v65 = vmul.f32 %v64, 1.442695
    %v66 = vpow.pop %v65
    %v67 = vstv %s62
    %v68 = vmul.f32 %v67, %v66
    %v69 = vadd.f32 %v68, 0.0
    %s70 = sld [smem:[#allocation2 + $0x1]]
    %v71 = vstv %s70
    %v72 = vsub.f32 %v55, %v71
    %s73 = sld [smem:[#allocation6 + $0x1]]
    %v74 = vstv %s73
    %v75 = vmul.f32 %v72, %v74
    %s76 = sld [smem:[#allocation8 + $0x1]]
    %v77 = vmul.f32 %v75, %v75
    %v78 = vmul.f32 %v77, -0.5
    %v79 = vmul.f32 %v78, 1.442695
    %v80 = vpow.pop %v79
    %v81 = vstv %s76
    %v82 = vmul.f32 %v81, %v80
    %v83 = vadd.f32 %v69, %v82
    %s84 = sld [smem:[#allocation2 + $0x2]]
    %v85 = vstv %s84
    %v86 = vsub.f32 %v55, %v85
    %s87 = sld [smem:[#allocation6 + $0x2]]
    %v88 = vstv %s87
    %v89 = vmul.f32 %v86, %v88
    %s90 = sld [smem:[#allocation8 + $0x2]]
    %v91 = vmul.f32 %v89, %v89
    %v92 = vmul.f32 %v91, -0.5
    %v93 = vmul.f32 %v92, 1.442695
    %v94 = vpow.pop %v93
    %v95 = vstv %s90
    %v96 = vmul.f32 %v95, %v94
    %v97 = vadd.f32 %v83, %v96
    %s98 = sld [smem:[#allocation2 + $0x3]]
    %v99 = vstv %s98
    %v100 = vsub.f32 %v55, %v99
    %s101 = sld [smem:[#allocation6 + $0x3]]
    %v102 = vstv %s101
    %v103 = vmul.f32 %v100, %v102
    %s104 = sld [smem:[#allocation8 + $0x3]]
    %v105 = vmul.f32 %v103, %v103
    %v106 = vmul.f32 %v105, -0.5
    %v107 = vmul.f32 %v106, 1.442695
    %v108 = vpow.pop %v107
    %v109 = vstv %s104
    %v110 = vmul.f32 %v109, %v108
    %v111 = vadd.f32 %v97, %v110
    %112 = vst [vmem:[#allocation9] sm:$0x1] %v111
    // Predicated region
    $region30: #{tpu_custom_call.1} parent=1 // pred_check
      _
    $region31: #{tpu_custom_call.1} parent=1 // pred_check_branch
      %114 = sbr.rel (0) target = $region33
    $region32: #{tpu_custom_call.1} parent=1 // pred_region
      %116 = vsyncadd [#allocation3], 0
      %s118 = sshll.u32 [#allocation9], 4
      %s119 = int_to_ptr.vmem [resolvable:$true] %s118
      %s120 = sshll.u32 %s4, 4
      %s121 = int_to_ptr.hbm [resolvable:$true] %s120
      %123 = dma.vmem_to_hbm [thread:$0]  %s119, 16, %s121, [#allocation3]
    $region33: #{tpu_custom_call.1} parent=1 // pred_fallthru
      _
    // Predicated region
    $region34: #{tpu_custom_call.1} parent=1 // pred_check
      _
    $region35: #{tpu_custom_call.1} parent=1 // pred_check_branch
      %125 = sbr.rel (0) target = $region37
    $region36: #{tpu_custom_call.1} parent=1 // pred_region
      %127 = dma.done [#allocation3], 16
    $region37: #{tpu_custom_call.1} parent=1 // pred_fallthru
      _
    %128 = vsyncpa [#allocation3], 1
    %129 = vsyncpa [#allocation4], 1
    %130 = vsyncpa [#allocation7], 1
    %131 = vsyncpa [#allocation5], 1

</llo_original>
